<compile_context>
chip_gen: v7x
topology: tpu7x:2x2x1
jax: 0.10.0
libtpu: 0.0.40
codegen_flags: <defaults>
</compile_context>

<pallas_src>
import jax
import jax.numpy as jnp
from jax.experimental import pallas as pl
from jax.experimental.pallas import tpu as pltpu

B = 8      # batch of pos/neg prediction pairs
N = 128    # predictions per row -> lane-dense (full 128-lane vregs)
EPS = 1e-6


def bpr_loss_kernel(pos_ref, neg_ref, loss_ref):
    # Load in native dtype, compute in f32 (v5e has no bf16 VPU/EUP paths).
    pos = pos_ref[...].astype(jnp.float32)        # (B, N)
    neg = neg_ref[...].astype(jnp.float32)        # (B, N)
    distance = pos - neg
    # PyTorch: log(1e-6 + 1 + exp(-distance)), summed over every element.
    elem = jnp.log(EPS + 1.0 + jnp.exp(-distance))
    # reduction='mean' acts on the already-summed 0-d value -> no-op; just sum.
    loss_ref[0, 0] = jnp.sum(elem)                # scalar sst into SMEM


def bpr_loss(pos_preds, neg_preds):
    """pos_preds, neg_preds: (B, N) float arrays. Returns the scalar BPR loss."""
    b, n = pos_preds.shape
    elem_bytes = (pos_preds.dtype.itemsize + neg_preds.dtype.itemsize) * b * n
    out = pl.pallas_call(
        bpr_loss_kernel,
        out_shape=jax.ShapeDtypeStruct((1, 1), jnp.float32),
        in_specs=[
            pl.BlockSpec(memory_space=pltpu.MemorySpace.VMEM),
            pl.BlockSpec(memory_space=pltpu.MemorySpace.VMEM),
        ],
        out_specs=pl.BlockSpec(memory_space=pltpu.MemorySpace.SMEM),
        cost_estimate=pl.CostEstimate(
            flops=4 * b * n,            # sub, (+eps+1), reduce
            transcendentals=2 * b * n,  # exp + log per element
            bytes_accessed=elem_bytes + 4,
        ),
    )(pos_preds, neg_preds)
    return out[0, 0]


def reference_loss(pos_preds, neg_preds):
    """Plain-JAX mirror of the PyTorch forward for validation."""
    d = pos_preds.astype(jnp.float32) - neg_preds.astype(jnp.float32)
    loss = jnp.sum(jnp.log(EPS + 1.0 + jnp.exp(-d)))
    return loss  # .mean() on the 0-d result is a no-op


if __name__ == "__main__":
    key = jax.random.PRNGKey(0)
    k1, k2 = jax.random.split(key)
    pos = jax.random.normal(k1, (B, N), jnp.float32)
    neg = jax.random.normal(k2, (B, N), jnp.float32)

    loss = bpr_loss(pos, neg)
    jax.block_until_ready(loss)

    ref = reference_loss(pos, neg)
    assert abs(float(loss) - float(ref)) <= 1e-3 * max(1.0, abs(float(ref))), (
        float(loss), float(ref))

    print("KERNEL_OK")
</pallas_src>

<mosaic_0001>
module attributes {stable_mosaic.version = 11 : i64} {
  func.func @bpr_loss_kernel(%arg0: memref<8x128xf32, #tpu.memory_space<vmem>>, %arg1: memref<8x128xf32, #tpu.memory_space<vmem>>, %arg2: memref<1x1xf32, #tpu.memory_space<smem>>) attributes {dimension_semantics = [], scalar_prefetch = 0 : i64, scratch_operands = 0 : i64, tpu.core_type = #tpu.core_type<tc>} {
    %c0 = arith.constant 0 : index
    %c0_0 = arith.constant 0 : index
    %0 = vector.load %arg0[%c0, %c0_0] : memref<8x128xf32, #tpu.memory_space<vmem>>, vector<8x128xf32>
    %c0_1 = arith.constant 0 : index
    %c0_2 = arith.constant 0 : index
    %1 = vector.load %arg1[%c0_1, %c0_2] : memref<8x128xf32, #tpu.memory_space<vmem>>, vector<8x128xf32>
    %2 = arith.subf %0, %1 : vector<8x128xf32>
    %cst = arith.constant 0.000000e+00 : f32
    %3 = vector.broadcast %cst : f32 to vector<8x128xf32>
    %4 = arith.subf %3, %2 : vector<8x128xf32>
    %5 = math.exp %4 : vector<8x128xf32>
    %cst_3 = arith.constant 1.00000095 : f32
    %6 = vector.broadcast %cst_3 : f32 to vector<8x128xf32>
    %7 = arith.addf %6, %5 : vector<8x128xf32>
    %8 = math.log %7 : vector<8x128xf32>
    %9 = vector.shape_cast %8 : vector<8x128xf32> to vector<1x8x128xf32>
    %cst_4 = arith.constant dense<0.000000e+00> : vector<1xf32>
    %10 = vector.multi_reduction <add>, %9, %cst_4 [1, 2] : vector<1x8x128xf32> to vector<1xf32>
    %11 = vector.shape_cast %10 : vector<1xf32> to vector<1x1x1xf32>
    %12 = vector.extract %11[0, 0, 0] : f32 from vector<1x1x1xf32>
    %c0_5 = arith.constant 0 : index
    %c0_6 = arith.constant 0 : index
    %13 = memref.load %arg2[%c0_5, %c0_6] : memref<1x1xf32, #tpu.memory_space<smem>>
    memref.store %12, %arg2[%c0_5, %c0_6] : memref<1x1xf32, #tpu.memory_space<smem>>
    return
  }
}

</mosaic_0001>

<llo_original>
// kernel: tpu_custom_call.1
$region0: #{tpu_custom_call.1}
  #allocation0 [shape = 'u32[]', space=smem, size = 0x4, offset = 0x4, fixed_abs, tag = 'smem constant byte address 0x4 - core index']
  #allocation1 [shape = 'u32[144,128]{1,0:T(1,128)}', space=vmem, size = 0x12000, scoped, tag = 'internal scratch']
  %s0 = inlined_call_operand.hbm [shape: f32[8,128], index: 0, kind: input, shape index: {}]
  %s1 = inlined_call_operand.hbm [shape: f32[8,128], index: 1, kind: input, shape index: {}]
  %s2 = inlined_call_operand.hbm [shape: f32[1,1], index: 2, kind: output, shape index: {}]
  %s3 = sld [smem:[#allocation0]]
  $region26: #{tpu_custom_call.1} parent=0
    _
  %s5 = ssub.s32 1, %s3
  %s6 = scalar_select 0, %s5, %s3
  $region1: #{tpu_custom_call.1} parent=0
    #allocation2 [shape = 'u8[4096]{0}', space=vmem, size = 0x1000, scoped, tag = 'input window, operand 0, single buffered']
    #allocation3 [shape = 's32[1]{0}', space=sflag, size = 0x4, scoped, tag = 'scoped memory for tpu_custom_call.1']
    #allocation4 [shape = 's32[1]{0}', space=sflag, size = 0x4, scoped, tag = 'scoped memory for tpu_custom_call.1']
    #allocation5 [shape = 'u8[4096]{0}', space=vmem, size = 0x1000, scoped, tag = 'input window, operand 1, single buffered']
    #allocation6 [shape = 's32[1]{0}', space=sflag, size = 0x4, scoped, tag = 'scoped memory for tpu_custom_call.1']
    #allocation7 [shape = 'u8[512]{0}', space=smem, size = 0x200, scoped, tag = 'output window, operand 0, single buffered']
    %7 = vsyncpa [#allocation3], 0
    %8 = vsyncpa [#allocation6], 0
    %9 = vsyncpa [#allocation4], 0
    // Predicated region
    $region2: #{tpu_custom_call.1} parent=1 // pred_check
      _
    $region3: #{tpu_custom_call.1} parent=1 // pred_check_branch
      %11 = sbr.rel (0) target = $region5
    $region4: #{tpu_custom_call.1} parent=1 // pred_region
      %s13 = ssub.s32 128, 128
      %14 = vsyncadd [#allocation3], %s13
      %s16 = sshll.u32 [#allocation2], 4
      %s17 = int_to_ptr.vmem [resolvable:$true] %s16
      %19 = dma.hbm_to_vmem [thread:$0]  %s0, 128, %s17, [#allocation3]
    $region5: #{tpu_custom_call.1} parent=1 // pred_fallthru
      _
    // Predicated region
    $region6: #{tpu_custom_call.1} parent=1 // pred_check
      _
    $region7: #{tpu_custom_call.1} parent=1 // pred_check_branch
      %21 = sbr.rel (0) target = $region9
    $region8: #{tpu_custom_call.1} parent=1 // pred_region
      %s23 = ssub.s32 128, 128
      %24 = vsyncadd [#allocation6], %s23
      %s26 = sshll.u32 [#allocation5], 4
      %s27 = int_to_ptr.vmem [resolvable:$true] %s26
      %29 = dma.hbm_to_vmem [thread:$0]  %s1, 128, %s27, [#allocation6]
    $region9: #{tpu_custom_call.1} parent=1 // pred_fallthru
      _
    // Predicated region
    $region10: #{tpu_custom_call.1} parent=1 // pred_check
      _
    $region11: #{tpu_custom_call.1} parent=1 // pred_check_branch
      %31 = sbr.rel (0) target = $region13
    $region12: #{tpu_custom_call.1} parent=1 // pred_region
      %32 = dma.done [#allocation3], 128
    $region13: #{tpu_custom_call.1} parent=1 // pred_fallthru
      _
    // Predicated region
    $region14: #{tpu_custom_call.1} parent=1 // pred_check
      _
    $region15: #{tpu_custom_call.1} parent=1 // pred_check_branch
      %34 = sbr.rel (0) target = $region17
    $region16: #{tpu_custom_call.1} parent=1 // pred_region
      %35 = dma.done [#allocation6], 128
    $region17: #{tpu_custom_call.1} parent=1 // pred_fallthru
      _
    %v36 = vld [vmem:[#allocation2] sm:$0xff]
    %v37 = vld [vmem:[#allocation5] sm:$0xff]
    %v38 = vsub.f32 %v36, %v37
    %v39 = vsub.f32 0.0, %v38
    %v40 = vmul.f32 %v39, 1.442695
    %v41 = vpow.pop %v40
    %v42 = vadd.f32 %v41, 1.000001
    %v43 = vlog2.pop %v42
    %v44 = vmul.f32 %v43, 0.6931472
    %45 = vadd.xlane.f32.xlu0 %v44
    %v46 = vpop.xlane.xlu0 %45
    %v47 = vrot.slane %v46, 4
    %v48 = vadd.f32 %v46, %v47
    %v49 = vrot.slane %v48, 2
    %v50 = vadd.f32 %v48, %v49
    %v51 = vrot.slane %v50, 1
    %v52 = vadd.f32 %v50, %v51
    %s53 = vtos %v52
    %s54 = scalar_lea.smem [#allocation7], 0
    %55 = sst [smem:[%s54]] %s53
    // Predicated region
    $region18: #{tpu_custom_call.1} parent=1 // pred_check
      _
    $region19: #{tpu_custom_call.1} parent=1 // pred_check_branch
      %57 = sbr.rel (0) target = $region21
    $region20: #{tpu_custom_call.1} parent=1 // pred_region
      %s59 = ssub.s32 16, 16
      %60 = vsyncadd [#allocation4], %s59
      %63 = dma.smem_to_hbm [#allocation7], 16, %s2, [#allocation4]
    $region21: #{tpu_custom_call.1} parent=1 // pred_fallthru
      _
    // Predicated region
    $region22: #{tpu_custom_call.1} parent=1 // pred_check
      _
    $region23: #{tpu_custom_call.1} parent=1 // pred_check_branch
      %65 = sbr.rel (0) target = $region25
    $region24: #{tpu_custom_call.1} parent=1 // pred_region
      %66 = dma.done [#allocation4], 16
    $region25: #{tpu_custom_call.1} parent=1 // pred_fallthru
      _
    %67 = sfence
    %68 = vsyncpa [#allocation3], 1
    %69 = vsyncpa [#allocation6], 1
    %70 = vsyncpa [#allocation4], 1

</llo_original>
